<compile_context>
chip_gen: v7x
topology: tpu7x:2x2x1
jax: 0.10.0
libtpu: 0.0.40
codegen_flags: <defaults>
</compile_context>

<pallas_src>
import jax
import jax.numpy as jnp
from jax.experimental import pallas as pl
from jax.experimental.pallas import tpu as pltpu


def crl_kernel(x_ref, pred_ref, ca_ref, o_ref):
    """Elementwise: out = x * (x * (1 - pred) + ca).  All refs are (BR, LANE)."""
    x = x_ref[...]
    att_x = x * (1.0 - pred_ref[...]) + ca_ref[...]
    o_ref[...] = (x * att_x).astype(o_ref.dtype)


def crl_forward(x, pred, ca, *, lane=512, max_block_rows=1024):
    """Pallas forward mirroring CRL.forward(x, pred, ca).

    Inputs are arbitrary-rank arrays (e.g. NCHW); `pred` / `ca` may be
    broadcast-compatible with `x` (PyTorch semantics).
    """
    orig_shape = x.shape
    orig_dtype = x.dtype

    # PyTorch-style broadcasting handled in the wrapper (glue, not kernel work).
    pred_b = jnp.broadcast_to(pred, orig_shape).astype(orig_dtype)
    ca_b = jnp.broadcast_to(ca, orig_shape).astype(orig_dtype)

    total = int(x.size)

    # Lane-dense 2D layout: (rows, lane) with lane a multiple of 128.
    rows = pl.cdiv(total, lane)
    if rows <= max_block_rows:
        block_rows = pl.cdiv(rows, 8) * 8          # sublane-aligned single block
    else:
        block_rows = max_block_rows                # multiple of 8
    rows_padded = pl.cdiv(rows, block_rows) * block_rows
    padded_total = rows_padded * lane

    def to_slab(a):
        flat = a.reshape(-1)
        if padded_total != total:
            flat = jnp.pad(flat, (0, padded_total - total))
        return flat.reshape(rows_padded, lane)

    x2, p2, c2 = to_slab(x), to_slab(pred_b), to_slab(ca_b)

    grid = (rows_padded // block_rows,)
    blk = pl.BlockSpec((block_rows, lane), lambda i: (i, 0))

    out2 = pl.pallas_call(
        crl_kernel,
        out_shape=jax.ShapeDtypeStruct((rows_padded, lane), orig_dtype),
        grid=grid,
        in_specs=[blk, blk, blk],
        out_specs=blk,
        compiler_params=pltpu.CompilerParams(
            dimension_semantics=("parallel",)),   # independent blocks -> megacore OK
    )(x2, p2, c2)

    return out2.reshape(-1)[:total].reshape(orig_shape)


def crl_reference(x, pred, ca):
    """Pure-JAX reference mirroring the PyTorch module."""
    residual = x
    att = 1.0 - pred
    att_x = x * att
    att_x = att_x + ca
    return residual * att_x


if __name__ == "__main__":
    key = jax.random.PRNGKey(0)
    kx, kp, kc = jax.random.split(key, 3)

    N, C, H, W = 2, 4, 16, 16
    x = jax.random.normal(kx, (N, C, H, W), jnp.float32)
    # Prediction map in [0, 1] (typical saliency/attention usage), same shape as x.
    pred = jax.nn.sigmoid(jax.random.normal(kp, (N, C, H, W), jnp.float32))
    ca = jax.random.normal(kc, (N, C, H, W), jnp.float32)

    out = jax.block_until_ready(crl_forward(x, pred, ca))
    ref = jax.block_until_ready(crl_reference(x, pred, ca))

    assert out.shape == (N, C, H, W), out.shape
    assert jnp.allclose(out, ref, atol=1e-5, rtol=1e-5), (
        "max abs err %g" % float(jnp.max(jnp.abs(out - ref))))

    print("KERNEL_OK")
</pallas_src>

<mosaic_0001>
module attributes {stable_mosaic.version = 11 : i64} {
  func.func @crl_kernel(%arg0: i32, %arg1: memref<8x512xf32, #tpu.memory_space<vmem>>, %arg2: memref<8x512xf32, #tpu.memory_space<vmem>>, %arg3: memref<8x512xf32, #tpu.memory_space<vmem>>, %arg4: memref<8x512xf32, #tpu.memory_space<vmem>>) attributes {dimension_semantics = [#tpu.dimension_semantics<parallel>], iteration_bounds = array<i64: 1>, scalar_prefetch = 0 : i64, scratch_operands = 0 : i64, tpu.core_type = #tpu.core_type<tc>, window_params = [{transform_indices = @transform_0, window_bounds = array<i64: 8, 512>}, {transform_indices = @transform_1, window_bounds = array<i64: 8, 512>}, {transform_indices = @transform_2, window_bounds = array<i64: 8, 512>}, {transform_indices = @transform_3, window_bounds = array<i64: 8, 512>}]} {
    %c0 = arith.constant 0 : index
    %c0_0 = arith.constant 0 : index
    %0 = vector.load %arg1[%c0, %c0_0] : memref<8x512xf32, #tpu.memory_space<vmem>>, vector<8x512xf32>
    %c0_1 = arith.constant 0 : index
    %c0_2 = arith.constant 0 : index
    %1 = vector.load %arg2[%c0_1, %c0_2] : memref<8x512xf32, #tpu.memory_space<vmem>>, vector<8x512xf32>
    %cst = arith.constant 1.000000e+00 : f32
    %2 = vector.broadcast %cst : f32 to vector<8x512xf32>
    %3 = arith.subf %2, %1 : vector<8x512xf32>
    %4 = arith.mulf %0, %3 : vector<8x512xf32>
    %c0_3 = arith.constant 0 : index
    %c0_4 = arith.constant 0 : index
    %5 = vector.load %arg3[%c0_3, %c0_4] : memref<8x512xf32, #tpu.memory_space<vmem>>, vector<8x512xf32>
    %6 = arith.addf %4, %5 : vector<8x512xf32>
    %7 = arith.mulf %0, %6 : vector<8x512xf32>
    %c0_5 = arith.constant 0 : index
    %c0_6 = arith.constant 0 : index
    %8 = vector.load %arg4[%c0_5, %c0_6] : memref<8x512xf32, #tpu.memory_space<vmem>>, vector<8x512xf32>
    tpu.vector_store %arg4[%c0_5, %c0_6], %7 {strides = array<i32>} : memref<8x512xf32, #tpu.memory_space<vmem>>, vector<8x512xf32>,
    return
  }
  func.func @transform_0(%arg0: i32) -> (i32, i32) {
    %c0_i32 = arith.constant 0 : i32
    %c0_i32_0 = arith.constant 0 : i32
    return %arg0, %c0_i32 : i32, i32
  }
  func.func @transform_1(%arg0: i32) -> (i32, i32) {
    %c0_i32 = arith.constant 0 : i32
    %c0_i32_0 = arith.constant 0 : i32
    return %arg0, %c0_i32 : i32, i32
  }
  func.func @transform_2(%arg0: i32) -> (i32, i32) {
    %c0_i32 = arith.constant 0 : i32
    %c0_i32_0 = arith.constant 0 : i32
    return %arg0, %c0_i32 : i32, i32
  }
  func.func @transform_3(%arg0: i32) -> (i32, i32) {
    %c0_i32 = arith.constant 0 : i32
    %c0_i32_0 = arith.constant 0 : i32
    return %arg0, %c0_i32 : i32, i32
  }
}

</mosaic_0001>

<llo_original>
// kernel: tpu_custom_call.1
$region0: #{tpu_custom_call.1}
  #allocation0 [shape = 'u32[]', space=smem, size = 0x4, offset = 0x4, fixed_abs, tag = 'smem constant byte address 0x4 - core index']
  #allocation1 [shape = 'u32[144,128]{1,0:T(1,128)}', space=vmem, size = 0x12000, scoped, tag = 'internal scratch']
  %s0 = inlined_call_operand.hbm [shape: f32[8,512], index: 0, kind: input, shape index: {}]
  %s1 = inlined_call_operand.hbm [shape: f32[8,512], index: 1, kind: input, shape index: {}]
  %s2 = inlined_call_operand.hbm [shape: f32[8,512], index: 2, kind: input, shape index: {}]
  %s3 = inlined_call_operand.hbm [shape: f32[8,512], index: 3, kind: output, shape index: {}]
  %s4 = sld [smem:[#allocation0]]
  $region34: #{tpu_custom_call.1} parent=0
    _
  %s6 = ssub.s32 1, %s4
  %s7 = scalar_select 0, %s6, %s4
  $region1: #{tpu_custom_call.1} parent=0
    #allocation2 [shape = 'u8[16384]{0}', space=vmem, size = 0x4000, scoped, tag = 'input window, operand 0, single buffered']
    #allocation3 [shape = 's32[1]{0}', space=sflag, size = 0x4, scoped, tag = 'scoped memory for tpu_custom_call.1']
    #allocation4 [shape = 's32[1]{0}', space=sflag, size = 0x4, scoped, tag = 'scoped memory for tpu_custom_call.1']
    #allocation5 [shape = 'u8[16384]{0}', space=vmem, size = 0x4000, scoped, tag = 'input window, operand 1, single buffered']
    #allocation6 [shape = 's32[1]{0}', space=sflag, size = 0x4, scoped, tag = 'scoped memory for tpu_custom_call.1']
    #allocation7 [shape = 'u8[16384]{0}', space=vmem, size = 0x4000, scoped, tag = 'input window, operand 2, single buffered']
    #allocation8 [shape = 'u8[16384]{0}', space=vmem, size = 0x4000, scoped, tag = 'output window, operand 0, single buffered']
    %8 = vsyncpa [#allocation3], 0
    %9 = vsyncpa [#allocation6], 0
    %10 = vsyncpa [#allocation4], 0
    // Predicated region
    $region2: #{tpu_custom_call.1} parent=1 // pred_check
      _
    $region3: #{tpu_custom_call.1} parent=1 // pred_check_branch
      %12 = sbr.rel (0) target = $region5
    $region4: #{tpu_custom_call.1} parent=1 // pred_region
      %s14 = ssub.s32 512, 512
      %15 = vsyncadd [#allocation3], %s14
      %s17 = sshll.u32 [#allocation2], 4
      %s18 = int_to_ptr.vmem [resolvable:$true] %s17
      %20 = dma.hbm_to_vmem [thread:$0]  %s0, 512, %s18, [#allocation3]
    $region5: #{tpu_custom_call.1} parent=1 // pred_fallthru
      _
    // Predicated region
    $region6: #{tpu_custom_call.1} parent=1 // pred_check
      _
    $region7: #{tpu_custom_call.1} parent=1 // pred_check_branch
      %22 = sbr.rel (0) target = $region9
    $region8: #{tpu_custom_call.1} parent=1 // pred_region
      %s24 = ssub.s32 512, 512
      %25 = vsyncadd [#allocation6], %s24
      %s27 = sshll.u32 [#allocation5], 4
      %s28 = int_to_ptr.vmem [resolvable:$true] %s27
      %30 = dma.hbm_to_vmem [thread:$0]  %s1, 512, %s28, [#allocation6]
    $region9: #{tpu_custom_call.1} parent=1 // pred_fallthru
      _
    // Predicated region
    $region10: #{tpu_custom_call.1} parent=1 // pred_check
      _
    $region11: #{tpu_custom_call.1} parent=1 // pred_check_branch
      %32 = sbr.rel (0) target = $region13
    $region12: #{tpu_custom_call.1} parent=1 // pred_region
      %s34 = ssub.s32 512, 512
      %35 = vsyncadd [#allocation6], %s34
      %s37 = sshll.u32 [#allocation7], 4
      %s38 = int_to_ptr.vmem [resolvable:$true] %s37
      %40 = dma.hbm_to_vmem [thread:$0]  %s2, 512, %s38, [#allocation6]
    $region13: #{tpu_custom_call.1} parent=1 // pred_fallthru
      _
    // Predicated region
    $region14: #{tpu_custom_call.1} parent=1 // pred_check
      _
    $region15: #{tpu_custom_call.1} parent=1 // pred_check_branch
      %42 = sbr.rel (0) target = $region17
    $region16: #{tpu_custom_call.1} parent=1 // pred_region
      %43 = dma.done [#allocation3], 512
    $region17: #{tpu_custom_call.1} parent=1 // pred_fallthru
      _
    // Predicated region
    $region18: #{tpu_custom_call.1} parent=1 // pred_check
      _
    $region19: #{tpu_custom_call.1} parent=1 // pred_check_branch
      %45 = sbr.rel (0) target = $region21
    $region20: #{tpu_custom_call.1} parent=1 // pred_region
      %46 = dma.done [#allocation6], 512
    $region21: #{tpu_custom_call.1} parent=1 // pred_fallthru
      _
    // Predicated region
    $region22: #{tpu_custom_call.1} parent=1 // pred_check
      _
    $region23: #{tpu_custom_call.1} parent=1 // pred_check_branch
      %48 = sbr.rel (0) target = $region25
    $region24: #{tpu_custom_call.1} parent=1 // pred_region
      %49 = dma.done [#allocation6], 512
    $region25: #{tpu_custom_call.1} parent=1 // pred_fallthru
      _
    %v50 = vld [vmem:[#allocation2] sm:$0xff]
    %v51 = vld [vmem:[#allocation2 + $0x8] sm:$0xff]
    %v52 = vld [vmem:[#allocation2 + $0x10] sm:$0xff]
    %v53 = vld [vmem:[#allocation2 + $0x18] sm:$0xff]
    %v54 = vld [vmem:[#allocation5] sm:$0xff]
    %v55 = vld [vmem:[#allocation5 + $0x8] sm:$0xff]
    %v56 = vld [vmem:[#allocation5 + $0x10] sm:$0xff]
    %v57 = vld [vmem:[#allocation5 + $0x18] sm:$0xff]
    %v58 = vsub.f32 1.0, %v54
    %v59 = vsub.f32 1.0, %v55
    %v60 = vsub.f32 1.0, %v56
    %v61 = vsub.f32 1.0, %v57
    %v62 = vmul.f32 %v50, %v58
    %v63 = vmul.f32 %v51, %v59
    %v64 = vmul.f32 %v52, %v60
    %v65 = vmul.f32 %v53, %v61
    %v66 = vld [vmem:[#allocation7] sm:$0xff]
    %v67 = vld [vmem:[#allocation7 + $0x8] sm:$0xff]
    %v68 = vld [vmem:[#allocation7 + $0x10] sm:$0xff]
    %v69 = vld [vmem:[#allocation7 + $0x18] sm:$0xff]
    %v70 = vadd.f32 %v62, %v66
    %v71 = vadd.f32 %v63, %v67
    %v72 = vadd.f32 %v64, %v68
    %v73 = vadd.f32 %v65, %v69
    %v74 = vmul.f32 %v50, %v70
    %v75 = vmul.f32 %v51, %v71
    %v76 = vmul.f32 %v52, %v72
    %v77 = vmul.f32 %v53, %v73
    %78 = vst [vmem:[#allocation8] sm:$0xff] %v74
    %79 = vst [vmem:[#allocation8 + $0x8] sm:$0xff] %v75
    %80 = vst [vmem:[#allocation8 + $0x10] sm:$0xff] %v76
    %81 = vst [vmem:[#allocation8 + $0x18] sm:$0xff] %v77
    // Predicated region
    $region26: #{tpu_custom_call.1} parent=1 // pred_check
      _
    $region27: #{tpu_custom_call.1} parent=1 // pred_check_branch
      %83 = sbr.rel (0) target = $region29
    $region28: #{tpu_custom_call.1} parent=1 // pred_region
      %s85 = ssub.s32 512, 512
      %86 = vsyncadd [#allocation4], %s85
      %s88 = sshll.u32 [#allocation8], 4
      %s89 = int_to_ptr.vmem [resolvable:$true] %s88
      %91 = dma.vmem_to_hbm [thread:$0]  %s89, 512, %s3, [#allocation4]
    $region29: #{tpu_custom_call.1} parent=1 // pred_fallthru
      _
    // Predicated region
    $region30: #{tpu_custom_call.1} parent=1 // pred_check
      _
    $region31: #{tpu_custom_call.1} parent=1 // pred_check_branch
      %93 = sbr.rel (0) target = $region33
    $region32: #{tpu_custom_call.1} parent=1 // pred_region
      %94 = dma.done [#allocation4], 512
    $region33: #{tpu_custom_call.1} parent=1 // pred_fallthru
      _
    %95 = vsyncpa [#allocation3], 1
    %96 = vsyncpa [#allocation6], 1
    %97 = vsyncpa [#allocation4], 1

</llo_original>
